<compile_context>
chip_gen: v5e
topology: v5e:2x2
jax: 0.10.0
libtpu: 0.0.40
codegen_flags: <defaults>
</compile_context>

<pallas_src>
import functools

import jax
import jax.numpy as jnp
from jax import lax
from jax.experimental import pallas as pl
from jax.experimental.pallas import tpu as pltpu


def _elevation_loss_kernel(pred_ref, h_ref, g_ref, out_ref, *, img_w):
    """One grid step: pred (2, H, L), heights/gt (H, L), L = n_imgs * img_w."""
    H, L = g_ref.shape

    # Cast after load (keeps HBM traffic at the caller's dtype).
    p_flood = pred_ref[0].astype(jnp.float32)
    p_dry = pred_ref[1].astype(jnp.float32)
    # argmax over the 2 channels (flood wins ties = torch.argmax first index)
    # fused with the signed unification: flood_pred where flood, else -dry_pred.
    unified = jnp.where(p_flood >= p_dry, p_flood, -p_dry)

    h_c = h_ref[...].astype(jnp.float32)
    gt = g_ref[...].astype(jnp.float32)

    # ---- border validity: direct comparisons, computed once, no rolls ------
    row_ids = lax.broadcasted_iota(jnp.int32, (H, L), 0)
    col_ids = lax.broadcasted_iota(jnp.int32, (H, L), 1)
    col_in_img = col_ids % img_w if L != img_w else col_ids
    row_ok = {-1: row_ids >= 1, 0: None, 1: row_ids <= H - 2}
    col_ok = {-1: col_in_img >= 1, 0: None, 1: col_in_img <= img_w - 2}

    def _and(a, b):
        if a is None:
            return b
        if b is None:
            return a
        return a & b

    # Pre-AND the 9 (dy, dx) combinations outside the unrolled stencil loop.
    ok = {(dy, dx): _and(row_ok[dy], col_ok[dx])
          for dy in (-1, 0, 1) for dx in (-1, 0, 1)}

    def rot(x, d, axis, n):
        # Bring the neighbour at offset +d along `axis` to the centre position.
        return pltpu.roll(x, (-d) % n, axis)

    # Hoist the sublane (dy) rolls; only the lane (dx) roll is per-offset (XLU).
    g_rows = {0: gt, -1: rot(gt, -1, 0, H), 1: rot(gt, 1, 0, H)}
    h_rows = {0: h_c, -1: rot(h_c, -1, 0, H), 1: rot(h_c, 1, 0, H)}

    acc = jnp.zeros((H, L), jnp.float32)
    # 3x3 neighbourhood (the Unfold(kernel=3, padding=1) patch), fully unrolled.
    for dy in (-1, 0, 1):
        for dx in (-1, 0, 1):
            g = g_rows[dy]
            hn = h_rows[dy]
            if dx != 0:
                g = rot(g, dx, 1, L)
                hn = rot(hn, dx, 1, L)
            m = ok[(dy, dx)]
            if m is not None:
                g = jnp.where(m, g, 0.0)   # zero-pad semantics at the borders
            if dy == 0 and dx == 0:
                keep = g != 0.0            # delta == 0 at the centre pixel
            else:
                delta = h_c - hn
                # g in {-1,0,1}: (flood & higher) or (dry & lower) <=> g*delta > 0
                keep = (g != 0.0) & (g * delta <= 0.0)
            acc += jnp.where(keep, 1.0 - g * unified, 0.0)

    # Finish the reduction in-kernel (XLU is idle): one scalar partial per step.
    out_ref[...] = jnp.sum(jnp.sum(acc, axis=1, keepdims=True),
                           axis=0, keepdims=True).reshape(1, 1, 1)


def elevation_loss(pred_labels, heights, gt_labels):
    """Pallas implementation of ElevationLoss.forward. Returns a scalar."""
    B, C, H, W = pred_labels.shape
    assert C == 2, "expects 2 channels (flood, dry)"
    assert heights.shape == (B, 1, H, W)
    assert gt_labels.shape == (B, 1, H, W)

    h = heights[:, 0]      # (B, H, W)
    g = gt_labels[:, 0]    # (B, H, W)

    if W < 128:
        # Lane-fold the batch: (B,*,H,W) -> (*,H,B,W) -> (*,H,B*W) so each vreg
        # carries up to 128 useful lanes instead of W (layout plumbing only).
        n_per_step = min(B, max(1, 128 // W))
        while B % n_per_step:
            n_per_step -= 1
        lane = n_per_step * W
        if lane % 128 and lane != B * W:
            # Keep the lane block a multiple of 128, or the full extent.
            n_per_step, lane = B, B * W
        n_steps = B // n_per_step
        pred_in = jnp.transpose(pred_labels, (1, 2, 0, 3)).reshape(C, H, B * W)
        h_in = jnp.transpose(h, (1, 0, 2)).reshape(H, B * W)
        g_in = jnp.transpose(g, (1, 0, 2)).reshape(H, B * W)
        in_specs = [
            pl.BlockSpec((C, H, lane), lambda t: (0, 0, t)),
            pl.BlockSpec((H, lane), lambda t: (0, t)),
            pl.BlockSpec((H, lane), lambda t: (0, t)),
        ]
    else:
        # Already lane-dense: one image per grid step, no layout change.
        n_steps = B
        pred_in, h_in, g_in = pred_labels, h, g
        in_specs = [
            pl.BlockSpec((pl.Squeezed(), C, H, W), lambda t: (t, 0, 0, 0)),
            pl.BlockSpec((pl.Squeezed(), H, W), lambda t: (t, 0, 0)),
            pl.BlockSpec((pl.Squeezed(), H, W), lambda t: (t, 0, 0)),
        ]

    kernel = functools.partial(_elevation_loss_kernel, img_w=W)
    partials = pl.pallas_call(
        kernel,
        out_shape=jax.ShapeDtypeStruct((n_steps, 1, 1), jnp.float32),
        grid_spec=pltpu.PrefetchScalarGridSpec(
            num_scalar_prefetch=0,
            grid=(n_steps,),
            in_specs=in_specs,
            # One 4-byte partial per step (tiny final jnp.sum in the wrapper).
            out_specs=pl.BlockSpec((1, 1, 1), lambda t: (t, 0, 0)),
        ),
        compiler_params=pltpu.CompilerParams(
            dimension_semantics=("parallel",)),
    )(pred_in, h_in, g_in)
    return jnp.sum(partials)


def elevation_loss_ref(pred_labels, heights, gt_labels):
    """Pure-JAX reference mirroring the PyTorch module."""
    B, C, H, W = pred_labels.shape
    idx = jnp.argmax(pred_labels, axis=1)[:, None]              # (B,1,H,W)
    flood_pred, dry_pred = jnp.split(pred_labels, 2, axis=1)
    flood_mask = (idx == 0).astype(jnp.float32)
    dry_mask = (idx == 1).astype(jnp.float32)
    unified = flood_pred * flood_mask - dry_pred * dry_mask     # (B,1,H,W)

    def unfold(x):                                              # (B,1,H,W) -> (B,H*W,9)
        xp = jnp.pad(x, ((0, 0), (0, 0), (1, 1), (1, 1)))
        cols = [xp[:, 0, dy:dy + H, dx:dx + W].reshape(B, H * W)
                for dy in range(3) for dx in range(3)]
        return jnp.stack(cols, axis=-1)

    gtu = unfold(gt_labels.astype(jnp.float32))
    hu = unfold(heights.astype(jnp.float32))
    pred_flat = unified.reshape(B, H * W, 1)
    h_flat = heights.astype(jnp.float32).reshape(B, H * W, 1)

    score = 1.0 - gtu * pred_flat
    delta = h_flat - hu
    unknown = jnp.where(gtu == 0.0, 0.0, 1.0)
    pos = (delta > 0).astype(jnp.float32)
    neg = (delta < 0).astype(jnp.float32)
    gfl = (gtu == 1.0).astype(jnp.float32)
    gdr = (gtu == -1.0).astype(jnp.float32)
    loss = unknown * (1.0 - gfl * pos) * (1.0 - gdr * neg) * score
    return jnp.sum(loss)


if __name__ == "__main__":
    key = jax.random.PRNGKey(0)
    k1, k2, k3 = jax.random.split(key, 3)

    loss_fn = jax.jit(elevation_loss)

    # Small NCHW shapes implied by the module (batch=2, channels=2, spatial=16):
    # exercises the lane-folded (W < 128) path.
    B, C, H, W = 2, 2, 16, 16
    pred_labels = jax.random.normal(k1, (B, C, H, W), dtype=jnp.float32)
    heights = jax.random.normal(k2, (B, 1, H, W), dtype=jnp.float32)
    gt_labels = jax.random.randint(k3, (B, 1, H, W), -1, 2).astype(jnp.float32)

    out = jax.block_until_ready(loss_fn(pred_labels, heights, gt_labels))
    ref = elevation_loss_ref(pred_labels, heights, gt_labels)
    assert jnp.allclose(out, ref, rtol=1e-5, atol=1e-3), (out, ref)

    # Also exercise the already-lane-dense (W >= 128) per-batch grid path.
    k4, k5, k6 = jax.random.split(k2, 3)
    B2, H2, W2 = 2, 8, 128
    p2 = jax.random.normal(k4, (B2, 2, H2, W2), dtype=jnp.float32)
    h2 = jax.random.normal(k5, (B2, 1, H2, W2), dtype=jnp.float32)
    g2 = jax.random.randint(k6, (B2, 1, H2, W2), -1, 2).astype(jnp.float32)

    out2 = jax.block_until_ready(loss_fn(p2, h2, g2))
    ref2 = elevation_loss_ref(p2, h2, g2)
    assert jnp.allclose(out2, ref2, rtol=1e-5, atol=1e-3), (out2, ref2)

    print("KERNEL_OK")
</pallas_src>

<mosaic_0001>
module attributes {stable_mosaic.version = 11 : i64} {
  func.func @_elevation_loss_kernel(%arg0: i32, %arg1: memref<2x16x32xf32, #tpu.memory_space<vmem>>, %arg2: memref<16x32xf32, #tpu.memory_space<vmem>>, %arg3: memref<16x32xf32, #tpu.memory_space<vmem>>, %arg4: memref<1x1x1xf32, #tpu.memory_space<vmem>>) attributes {dimension_semantics = [#tpu.dimension_semantics<parallel>], iteration_bounds = array<i64: 1>, scalar_prefetch = 0 : i64, scratch_operands = 0 : i64, tpu.core_type = #tpu.core_type<tc>, window_params = [{transform_indices = @transform_0, window_bounds = array<i64: 2, 16, 32>}, {transform_indices = @transform_1, window_bounds = array<i64: 16, 32>}, {transform_indices = @transform_2, window_bounds = array<i64: 16, 32>}, {transform_indices = @transform_3, window_bounds = array<i64: 1, 1, 1>}]} {
    %c0 = arith.constant 0 : index
    %c0_0 = arith.constant 0 : index
    %c0_1 = arith.constant 0 : index
    %0 = vector.load %arg1[%c0, %c0_0, %c0_1] : memref<2x16x32xf32, #tpu.memory_space<vmem>>, vector<1x16x32xf32>
    %1 = vector.shape_cast %0 : vector<1x16x32xf32> to vector<16x32xf32>
    %c1 = arith.constant 1 : index
    %c0_2 = arith.constant 0 : index
    %c0_3 = arith.constant 0 : index
    %2 = vector.load %arg1[%c1, %c0_2, %c0_3] : memref<2x16x32xf32, #tpu.memory_space<vmem>>, vector<1x16x32xf32>
    %3 = vector.shape_cast %2 : vector<1x16x32xf32> to vector<16x32xf32>
    %4 = arith.cmpf oge, %1, %3 : vector<16x32xf32>
    %cst = arith.constant 0.000000e+00 : f32
    %5 = vector.broadcast %cst : f32 to vector<16x32xf32>
    %6 = arith.subf %5, %3 : vector<16x32xf32>
    %7 = arith.select %4, %1, %6 : vector<16x32xi1>, vector<16x32xf32>
    %c0_4 = arith.constant 0 : index
    %c0_5 = arith.constant 0 : index
    %8 = vector.load %arg2[%c0_4, %c0_5] : memref<16x32xf32, #tpu.memory_space<vmem>>, vector<16x32xf32>
    %c0_6 = arith.constant 0 : index
    %c0_7 = arith.constant 0 : index
    %9 = vector.load %arg3[%c0_6, %c0_7] : memref<16x32xf32, #tpu.memory_space<vmem>>, vector<16x32xf32>
    %10 = tpu.iota {dimensions = array<i32: 0>} : vector<16x32xi32>
    %11 = tpu.iota {dimensions = array<i32: 1>} : vector<16x32xi32>
    %c16_i32 = arith.constant 16 : i32
    %c0_i32 = arith.constant 0 : i32
    %12 = arith.cmpi eq, %c16_i32, %c0_i32 : i32
    %c1_i32 = arith.constant 1 : i32
    %13 = arith.select %12, %c1_i32, %c16_i32 : i32
    %14 = vector.broadcast %13 : i32 to vector<16x32xi32>
    %15 = arith.remsi %11, %14 : vector<16x32xi32>
    %c0_i32_8 = arith.constant 0 : i32
    %16 = vector.broadcast %c0_i32_8 : i32 to vector<16x32xi32>
    %17 = arith.cmpi ne, %15, %16 : vector<16x32xi32>
    %c0_i32_9 = arith.constant 0 : i32
    %18 = vector.broadcast %c0_i32_9 : i32 to vector<16x32xi32>
    %19 = arith.cmpi slt, %15, %18 : vector<16x32xi32>
    %c0_i32_10 = arith.constant 0 : i32
    %20 = arith.cmpi slt, %13, %c0_i32_10 : i32
    %21 = vector.broadcast %20 : i1 to vector<16x32xi1>
    %22 = vector.broadcast %21 : vector<16x32xi1> to vector<16x32xi1>
    %23 = arith.xori %19, %22 : vector<16x32xi1>
    %24 = arith.andi %23, %17 : vector<16x32xi1>
    %25 = vector.broadcast %13 : i32 to vector<16x32xi32>
    %26 = arith.addi %15, %25 : vector<16x32xi32>
    %27 = arith.select %24, %26, %15 : vector<16x32xi1>, vector<16x32xi32>
    %c1_i32_11 = arith.constant 1 : i32
    %28 = vector.broadcast %c1_i32_11 : i32 to vector<16x32xi32>
    %29 = arith.cmpi sge, %10, %28 : vector<16x32xi32>
    %c14_i32 = arith.constant 14 : i32
    %30 = vector.broadcast %c14_i32 : i32 to vector<16x32xi32>
    %31 = arith.cmpi sle, %10, %30 : vector<16x32xi32>
    %c1_i32_12 = arith.constant 1 : i32
    %32 = vector.broadcast %c1_i32_12 : i32 to vector<16x32xi32>
    %33 = arith.cmpi sge, %27, %32 : vector<16x32xi32>
    %c14_i32_13 = arith.constant 14 : i32
    %34 = vector.broadcast %c14_i32_13 : i32 to vector<16x32xi32>
    %35 = arith.cmpi sle, %27, %34 : vector<16x32xi32>
    %36 = arith.andi %29, %33 : vector<16x32xi1>
    %37 = arith.andi %29, %35 : vector<16x32xi1>
    %38 = arith.andi %31, %33 : vector<16x32xi1>
    %39 = arith.andi %31, %35 : vector<16x32xi1>
    %c1_i32_14 = arith.constant 1 : i32
    %40 = tpu.dynamic_rotate %9 by %c1_i32_14 dim 0 : vector<16x32xf32>, i32 -> vector<16x32xf32>
    %c15_i32 = arith.constant 15 : i32
    %41 = tpu.dynamic_rotate %9 by %c15_i32 dim 0 : vector<16x32xf32>, i32 -> vector<16x32xf32>
    %c1_i32_15 = arith.constant 1 : i32
    %42 = tpu.dynamic_rotate %8 by %c1_i32_15 dim 0 : vector<16x32xf32>, i32 -> vector<16x32xf32>
    %c15_i32_16 = arith.constant 15 : i32
    %43 = tpu.dynamic_rotate %8 by %c15_i32_16 dim 0 : vector<16x32xf32>, i32 -> vector<16x32xf32>
    %cst_17 = arith.constant 0.000000e+00 : f32
    %44 = vector.broadcast %cst_17 : f32 to vector<16x32xf32>
    %c1_i32_18 = arith.constant 1 : i32
    %45 = tpu.dynamic_rotate %40 by %c1_i32_18 dim 1 : vector<16x32xf32>, i32 -> vector<16x32xf32>
    %c1_i32_19 = arith.constant 1 : i32
    %46 = tpu.dynamic_rotate %42 by %c1_i32_19 dim 1 : vector<16x32xf32>, i32 -> vector<16x32xf32>
    %cst_20 = arith.constant 0.000000e+00 : f32
    %47 = vector.broadcast %cst_20 : f32 to vector<16x32xf32>
    %48 = arith.select %36, %45, %47 : vector<16x32xi1>, vector<16x32xf32>
    %49 = arith.subf %8, %46 : vector<16x32xf32>
    %cst_21 = arith.constant 0.000000e+00 : f32
    %50 = vector.broadcast %cst_21 : f32 to vector<16x32xf32>
    %51 = arith.cmpf one, %48, %50 : vector<16x32xf32>
    %52 = arith.mulf %48, %49 : vector<16x32xf32>
    %cst_22 = arith.constant 0.000000e+00 : f32
    %53 = vector.broadcast %cst_22 : f32 to vector<16x32xf32>
    %54 = arith.cmpf ole, %52, %53 : vector<16x32xf32>
    %55 = arith.andi %51, %54 : vector<16x32xi1>
    %56 = arith.mulf %48, %7 : vector<16x32xf32>
    %cst_23 = arith.constant 1.000000e+00 : f32
    %57 = vector.broadcast %cst_23 : f32 to vector<16x32xf32>
    %58 = arith.subf %57, %56 : vector<16x32xf32>
    %cst_24 = arith.constant 0.000000e+00 : f32
    %59 = vector.broadcast %cst_24 : f32 to vector<16x32xf32>
    %60 = arith.select %55, %58, %59 : vector<16x32xi1>, vector<16x32xf32>
    %61 = arith.addf %44, %60 : vector<16x32xf32>
    %cst_25 = arith.constant 0.000000e+00 : f32
    %62 = vector.broadcast %cst_25 : f32 to vector<16x32xf32>
    %63 = arith.select %29, %40, %62 : vector<16x32xi1>, vector<16x32xf32>
    %64 = arith.subf %8, %42 : vector<16x32xf32>
    %cst_26 = arith.constant 0.000000e+00 : f32
    %65 = vector.broadcast %cst_26 : f32 to vector<16x32xf32>
    %66 = arith.cmpf one, %63, %65 : vector<16x32xf32>
    %67 = arith.mulf %63, %64 : vector<16x32xf32>
    %cst_27 = arith.constant 0.000000e+00 : f32
    %68 = vector.broadcast %cst_27 : f32 to vector<16x32xf32>
    %69 = arith.cmpf ole, %67, %68 : vector<16x32xf32>
    %70 = arith.andi %66, %69 : vector<16x32xi1>
    %71 = arith.mulf %63, %7 : vector<16x32xf32>
    %cst_28 = arith.constant 1.000000e+00 : f32
    %72 = vector.broadcast %cst_28 : f32 to vector<16x32xf32>
    %73 = arith.subf %72, %71 : vector<16x32xf32>
    %cst_29 = arith.constant 0.000000e+00 : f32
    %74 = vector.broadcast %cst_29 : f32 to vector<16x32xf32>
    %75 = arith.select %70, %73, %74 : vector<16x32xi1>, vector<16x32xf32>
    %76 = arith.addf %61, %75 : vector<16x32xf32>
    %c31_i32 = arith.constant 31 : i32
    %77 = tpu.dynamic_rotate %40 by %c31_i32 dim 1 : vector<16x32xf32>, i32 -> vector<16x32xf32>
    %c31_i32_30 = arith.constant 31 : i32
    %78 = tpu.dynamic_rotate %42 by %c31_i32_30 dim 1 : vector<16x32xf32>, i32 -> vector<16x32xf32>
    %cst_31 = arith.constant 0.000000e+00 : f32
    %79 = vector.broadcast %cst_31 : f32 to vector<16x32xf32>
    %80 = arith.select %37, %77, %79 : vector<16x32xi1>, vector<16x32xf32>
    %81 = arith.subf %8, %78 : vector<16x32xf32>
    %cst_32 = arith.constant 0.000000e+00 : f32
    %82 = vector.broadcast %cst_32 : f32 to vector<16x32xf32>
    %83 = arith.cmpf one, %80, %82 : vector<16x32xf32>
    %84 = arith.mulf %80, %81 : vector<16x32xf32>
    %cst_33 = arith.constant 0.000000e+00 : f32
    %85 = vector.broadcast %cst_33 : f32 to vector<16x32xf32>
    %86 = arith.cmpf ole, %84, %85 : vector<16x32xf32>
    %87 = arith.andi %83, %86 : vector<16x32xi1>
    %88 = arith.mulf %80, %7 : vector<16x32xf32>
    %cst_34 = arith.constant 1.000000e+00 : f32
    %89 = vector.broadcast %cst_34 : f32 to vector<16x32xf32>
    %90 = arith.subf %89, %88 : vector<16x32xf32>
    %cst_35 = arith.constant 0.000000e+00 : f32
    %91 = vector.broadcast %cst_35 : f32 to vector<16x32xf32>
    %92 = arith.select %87, %90, %91 : vector<16x32xi1>, vector<16x32xf32>
    %93 = arith.addf %76, %92 : vector<16x32xf32>
    %c1_i32_36 = arith.constant 1 : i32
    %94 = tpu.dynamic_rotate %9 by %c1_i32_36 dim 1 : vector<16x32xf32>, i32 -> vector<16x32xf32>
    %c1_i32_37 = arith.constant 1 : i32
    %95 = tpu.dynamic_rotate %8 by %c1_i32_37 dim 1 : vector<16x32xf32>, i32 -> vector<16x32xf32>
    %cst_38 = arith.constant 0.000000e+00 : f32
    %96 = vector.broadcast %cst_38 : f32 to vector<16x32xf32>
    %97 = arith.select %33, %94, %96 : vector<16x32xi1>, vector<16x32xf32>
    %98 = arith.subf %8, %95 : vector<16x32xf32>
    %cst_39 = arith.constant 0.000000e+00 : f32
    %99 = vector.broadcast %cst_39 : f32 to vector<16x32xf32>
    %100 = arith.cmpf one, %97, %99 : vector<16x32xf32>
    %101 = arith.mulf %97, %98 : vector<16x32xf32>
    %cst_40 = arith.constant 0.000000e+00 : f32
    %102 = vector.broadcast %cst_40 : f32 to vector<16x32xf32>
    %103 = arith.cmpf ole, %101, %102 : vector<16x32xf32>
    %104 = arith.andi %100, %103 : vector<16x32xi1>
    %105 = arith.mulf %97, %7 : vector<16x32xf32>
    %cst_41 = arith.constant 1.000000e+00 : f32
    %106 = vector.broadcast %cst_41 : f32 to vector<16x32xf32>
    %107 = arith.subf %106, %105 : vector<16x32xf32>
    %cst_42 = arith.constant 0.000000e+00 : f32
    %108 = vector.broadcast %cst_42 : f32 to vector<16x32xf32>
    %109 = arith.select %104, %107, %108 : vector<16x32xi1>, vector<16x32xf32>
    %110 = arith.addf %93, %109 : vector<16x32xf32>
    %cst_43 = arith.constant 0.000000e+00 : f32
    %111 = vector.broadcast %cst_43 : f32 to vector<16x32xf32>
    %112 = arith.cmpf one, %9, %111 : vector<16x32xf32>
    %113 = arith.mulf %9, %7 : vector<16x32xf32>
    %cst_44 = arith.constant 1.000000e+00 : f32
    %114 = vector.broadcast %cst_44 : f32 to vector<16x32xf32>
    %115 = arith.subf %114, %113 : vector<16x32xf32>
    %cst_45 = arith.constant 0.000000e+00 : f32
    %116 = vector.broadcast %cst_45 : f32 to vector<16x32xf32>
    %117 = arith.select %112, %115, %116 : vector<16x32xi1>, vector<16x32xf32>
    %118 = arith.addf %110, %117 : vector<16x32xf32>
    %c31_i32_46 = arith.constant 31 : i32
    %119 = tpu.dynamic_rotate %9 by %c31_i32_46 dim 1 : vector<16x32xf32>, i32 -> vector<16x32xf32>
    %c31_i32_47 = arith.constant 31 : i32
    %120 = tpu.dynamic_rotate %8 by %c31_i32_47 dim 1 : vector<16x32xf32>, i32 -> vector<16x32xf32>
    %cst_48 = arith.constant 0.000000e+00 : f32
    %121 = vector.broadcast %cst_48 : f32 to vector<16x32xf32>
    %122 = arith.select %35, %119, %121 : vector<16x32xi1>, vector<16x32xf32>
    %123 = arith.subf %8, %120 : vector<16x32xf32>
    %cst_49 = arith.constant 0.000000e+00 : f32
    %124 = vector.broadcast %cst_49 : f32 to vector<16x32xf32>
    %125 = arith.cmpf one, %122, %124 : vector<16x32xf32>
    %126 = arith.mulf %122, %123 : vector<16x32xf32>
    %cst_50 = arith.constant 0.000000e+00 : f32
    %127 = vector.broadcast %cst_50 : f32 to vector<16x32xf32>
    %128 = arith.cmpf ole, %126, %127 : vector<16x32xf32>
    %129 = arith.andi %125, %128 : vector<16x32xi1>
    %130 = arith.mulf %122, %7 : vector<16x32xf32>
    %cst_51 = arith.constant 1.000000e+00 : f32
    %131 = vector.broadcast %cst_51 : f32 to vector<16x32xf32>
    %132 = arith.subf %131, %130 : vector<16x32xf32>
    %cst_52 = arith.constant 0.000000e+00 : f32
    %133 = vector.broadcast %cst_52 : f32 to vector<16x32xf32>
    %134 = arith.select %129, %132, %133 : vector<16x32xi1>, vector<16x32xf32>
    %135 = arith.addf %118, %134 : vector<16x32xf32>
    %c1_i32_53 = arith.constant 1 : i32
    %136 = tpu.dynamic_rotate %41 by %c1_i32_53 dim 1 : vector<16x32xf32>, i32 -> vector<16x32xf32>
    %c1_i32_54 = arith.constant 1 : i32
    %137 = tpu.dynamic_rotate %43 by %c1_i32_54 dim 1 : vector<16x32xf32>, i32 -> vector<16x32xf32>
    %cst_55 = arith.constant 0.000000e+00 : f32
    %138 = vector.broadcast %cst_55 : f32 to vector<16x32xf32>
    %139 = arith.select %38, %136, %138 : vector<16x32xi1>, vector<16x32xf32>
    %140 = arith.subf %8, %137 : vector<16x32xf32>
    %cst_56 = arith.constant 0.000000e+00 : f32
    %141 = vector.broadcast %cst_56 : f32 to vector<16x32xf32>
    %142 = arith.cmpf one, %139, %141 : vector<16x32xf32>
    %143 = arith.mulf %139, %140 : vector<16x32xf32>
    %cst_57 = arith.constant 0.000000e+00 : f32
    %144 = vector.broadcast %cst_57 : f32 to vector<16x32xf32>
    %145 = arith.cmpf ole, %143, %144 : vector<16x32xf32>
    %146 = arith.andi %142, %145 : vector<16x32xi1>
    %147 = arith.mulf %139, %7 : vector<16x32xf32>
    %cst_58 = arith.constant 1.000000e+00 : f32
    %148 = vector.broadcast %cst_58 : f32 to vector<16x32xf32>
    %149 = arith.subf %148, %147 : vector<16x32xf32>
    %cst_59 = arith.constant 0.000000e+00 : f32
    %150 = vector.broadcast %cst_59 : f32 to vector<16x32xf32>
    %151 = arith.select %146, %149, %150 : vector<16x32xi1>, vector<16x32xf32>
    %152 = arith.addf %135, %151 : vector<16x32xf32>
    %cst_60 = arith.constant 0.000000e+00 : f32
    %153 = vector.broadcast %cst_60 : f32 to vector<16x32xf32>
    %154 = arith.select %31, %41, %153 : vector<16x32xi1>, vector<16x32xf32>
    %155 = arith.subf %8, %43 : vector<16x32xf32>
    %cst_61 = arith.constant 0.000000e+00 : f32
    %156 = vector.broadcast %cst_61 : f32 to vector<16x32xf32>
    %157 = arith.cmpf one, %154, %156 : vector<16x32xf32>
    %158 = arith.mulf %154, %155 : vector<16x32xf32>
    %cst_62 = arith.constant 0.000000e+00 : f32
    %159 = vector.broadcast %cst_62 : f32 to vector<16x32xf32>
    %160 = arith.cmpf ole, %158, %159 : vector<16x32xf32>
    %161 = arith.andi %157, %160 : vector<16x32xi1>
    %162 = arith.mulf %154, %7 : vector<16x32xf32>
    %cst_63 = arith.constant 1.000000e+00 : f32
    %163 = vector.broadcast %cst_63 : f32 to vector<16x32xf32>
    %164 = arith.subf %163, %162 : vector<16x32xf32>
    %cst_64 = arith.constant 0.000000e+00 : f32
    %165 = vector.broadcast %cst_64 : f32 to vector<16x32xf32>
    %166 = arith.select %161, %164, %165 : vector<16x32xi1>, vector<16x32xf32>
    %167 = arith.addf %152, %166 : vector<16x32xf32>
    %c31_i32_65 = arith.constant 31 : i32
    %168 = tpu.dynamic_rotate %41 by %c31_i32_65 dim 1 : vector<16x32xf32>, i32 -> vector<16x32xf32>
    %c31_i32_66 = arith.constant 31 : i32
    %169 = tpu.dynamic_rotate %43 by %c31_i32_66 dim 1 : vector<16x32xf32>, i32 -> vector<16x32xf32>
    %cst_67 = arith.constant 0.000000e+00 : f32
    %170 = vector.broadcast %cst_67 : f32 to vector<16x32xf32>
    %171 = arith.select %39, %168, %170 : vector<16x32xi1>, vector<16x32xf32>
    %172 = arith.subf %8, %169 : vector<16x32xf32>
    %cst_68 = arith.constant 0.000000e+00 : f32
    %173 = vector.broadcast %cst_68 : f32 to vector<16x32xf32>
    %174 = arith.cmpf one, %171, %173 : vector<16x32xf32>
    %175 = arith.mulf %171, %172 : vector<16x32xf32>
    %cst_69 = arith.constant 0.000000e+00 : f32
    %176 = vector.broadcast %cst_69 : f32 to vector<16x32xf32>
    %177 = arith.cmpf ole, %175, %176 : vector<16x32xf32>
    %178 = arith.andi %174, %177 : vector<16x32xi1>
    %179 = arith.mulf %171, %7 : vector<16x32xf32>
    %cst_70 = arith.constant 1.000000e+00 : f32
    %180 = vector.broadcast %cst_70 : f32 to vector<16x32xf32>
    %181 = arith.subf %180, %179 : vector<16x32xf32>
    %cst_71 = arith.constant 0.000000e+00 : f32
    %182 = vector.broadcast %cst_71 : f32 to vector<16x32xf32>
    %183 = arith.select %178, %181, %182 : vector<16x32xi1>, vector<16x32xf32>
    %184 = arith.addf %167, %183 : vector<16x32xf32>
    %cst_72 = arith.constant dense<0.000000e+00> : vector<16xf32>
    %185 = vector.multi_reduction <add>, %184, %cst_72 [1] : vector<16x32xf32> to vector<16xf32>
    %186 = vector.shape_cast %185 : vector<16xf32> to vector<16x1xf32>
    %cst_73 = arith.constant dense<0.000000e+00> : vector<1xf32>
    %187 = vector.multi_reduction <add>, %186, %cst_73 [0] : vector<16x1xf32> to vector<1xf32>
    %188 = vector.shape_cast %187 : vector<1xf32> to vector<1x1xf32>
    %189 = vector.shape_cast %188 : vector<1x1xf32> to vector<1x1x1xf32>
    %c0_74 = arith.constant 0 : index
    %c0_75 = arith.constant 0 : index
    %c0_76 = arith.constant 0 : index
    %190 = vector.load %arg4[%c0_74, %c0_75, %c0_76] : memref<1x1x1xf32, #tpu.memory_space<vmem>>, vector<1x1x1xf32>
    tpu.vector_store %arg4[%c0_74, %c0_75, %c0_76], %189 {strides = array<i32>} : memref<1x1x1xf32, #tpu.memory_space<vmem>>, vector<1x1x1xf32>,
    return
  }
  func.func @transform_0(%arg0: i32) -> (i32, i32, i32) {
    %c0_i32 = arith.constant 0 : i32
    %c0_i32_0 = arith.constant 0 : i32
    %c0_i32_1 = arith.constant 0 : i32
    return %c0_i32, %c0_i32_0, %arg0 : i32, i32, i32
  }
  func.func @transform_1(%arg0: i32) -> (i32, i32) {
    %c0_i32 = arith.constant 0 : i32
    %c0_i32_0 = arith.constant 0 : i32
    return %c0_i32, %arg0 : i32, i32
  }
  func.func @transform_2(%arg0: i32) -> (i32, i32) {
    %c0_i32 = arith.constant 0 : i32
    %c0_i32_0 = arith.constant 0 : i32
    return %c0_i32, %arg0 : i32, i32
  }
  func.func @transform_3(%arg0: i32) -> (i32, i32, i32) {
    %c0_i32 = arith.constant 0 : i32
    %c0_i32_0 = arith.constant 0 : i32
    %c0_i32_1 = arith.constant 0 : i32
    return %arg0, %c0_i32, %c0_i32_0 : i32, i32, i32
  }
}

</mosaic_0001>

<llo_original>
// kernel: elevation_loss.1
$region0: #{elevation_loss.1}
  #allocation0 [shape = 'u32[]', space=smem, size = 0x4, offset = 0x4, fixed_abs, tag = 'smem constant byte address 0x4 - core index']
  #allocation1 [shape = 'u32[72,128]{1,0:T(1,128)}', space=vmem, size = 0x9000, scoped, tag = 'internal scratch']
  %s0 = inlined_call_operand.vmem [shape: f32[2,16,32], index: 0, kind: input, shape index: {}]
  %s1 = inlined_call_operand.vmem [shape: f32[16,32], index: 1, kind: input, shape index: {}]
  %s2 = inlined_call_operand.vmem [shape: f32[16,32], index: 2, kind: input, shape index: {}]
  %s3 = inlined_call_operand.hbm [shape: f32[1,1,1], index: 3, kind: output, shape index: {}]
  %s4 = sld [smem:[#allocation0]]
  $region22: #{elevation_loss.1} parent=0
    _
  %s6 = ssub.s32 1, %s4
  %s7 = scalar_select 0, %s6, %s4
  $region1: #{elevation_loss.1} parent=0
    #allocation2 [shape = 'u8[512]{0}', space=vmem, size = 0x400, scoped, tag = 'output window, operand 0, single buffered']
    #allocation3 [shape = 's32[1]{0}', space=sflag, size = 0x4, scoped, tag = 'scoped memory for elevation_loss.1']
    %8 = vsyncpa [#allocation3], 0
    // Predicated region
    $region2: #{elevation_loss.1} parent=1 // pred_check
      _
    $region3: #{elevation_loss.1} parent=1 // pred_check_branch
      %10 = sbr.rel (0) target = $region5
    $region4: #{elevation_loss.1} parent=1 // pred_region
      _
    $region5: #{elevation_loss.1} parent=1 // pred_fallthru
      _
    // Predicated region
    $region6: #{elevation_loss.1} parent=1 // pred_check
      _
    $region7: #{elevation_loss.1} parent=1 // pred_check_branch
      %12 = sbr.rel (0) target = $region9
    $region8: #{elevation_loss.1} parent=1 // pred_region
      _
    $region9: #{elevation_loss.1} parent=1 // pred_fallthru
      _
    // Predicated region
    $region10: #{elevation_loss.1} parent=1 // pred_check
      _
    $region11: #{elevation_loss.1} parent=1 // pred_check_branch
      %14 = sbr.rel (0) target = $region13
    $region12: #{elevation_loss.1} parent=1 // pred_region
      _
    $region13: #{elevation_loss.1} parent=1 // pred_fallthru
      _
    %v15 = vld [vmem:[%s0] sm:$0xff]
    %v16 = vld [vmem:[%s0 + $0x8] sm:$0xff]
    %s17 = scalar_lea.vmem %s0, 16
    %v18 = vld [vmem:[%s17] sm:$0xff]
    %v19 = vld [vmem:[%s17 + $0x8] sm:$0xff]
    %vm20 = vcmp.ge.f32.partialorder %v15, %v18
    %vm21 = vcmp.ge.f32.partialorder %v16, %v19
    %v22 = vsub.f32 0.0, %v18
    %v23 = vsub.f32 0.0, %v19
    %v24 = vsel %vm20, %v15, %v22
    %v25 = vsel %vm21, %v16, %v23
    %v26 = vld [vmem:[%s1] sm:$0xff]
    %v27 = vld [vmem:[%s1 + $0x8] sm:$0xff]
    %v28 = vld [vmem:[%s2] sm:$0xff]
    %v29 = vld [vmem:[%s2 + $0x8] sm:$0xff]
    %v30 = vlaneseq
    %v31 = vshrl.u32 %v30, 7
    %v32 = vadd.s32 %v31, 8
    %v33 = vlaneseq
    %v34 = vand.u32 %v33, 127
    %vm35 = vcmp.lt.s32.totalorder %v34, 0
    %v36 = vsub.s32 0, %v34
    %v37 = vsel %vm35, %v36, %v34
    %v38 = vshrl.u32 %v37, 4
    %v39 = vand.u32 %v37, 15
    %v40 = vsub.s32 0, %v39
    %v41 = vsel %vm35, %v40, %v39
    %vm42 = vcmp.ne.s32.totalorder %v41, 0
    %vm43 = vcmp.lt.s32.totalorder %v41, 0
    %vm44 = vmand %vm43, %vm42
    %v45 = vadd.s32 %v41, 16
    %v46 = vsel %vm44, %v45, %v41
    %vm47 = vcmp.ge.s32.totalorder %v31, 1
    %vm48 = vcmp.ge.s32.totalorder %v32, 1
    %vm49 = vcmp.le.s32.totalorder %v31, 14
    %vm50 = vcmp.le.s32.totalorder %v32, 14
    %vm51 = vcmp.ge.s32.totalorder %v46, 1
    %vm52 = vcmp.le.s32.totalorder %v46, 14
    %vm53 = vmand %vm47, %vm51
    %vm54 = vmand %vm48, %vm51
    %vm55 = vmand %vm47, %vm52
    %vm56 = vmand %vm48, %vm52
    %vm57 = vmand %vm49, %vm51
    %vm58 = vmand %vm50, %vm51
    %vm59 = vmand %vm49, %vm52
    %vm60 = vmand %vm50, %vm52
    %v61 = vrot.slane %v28, 7
    %v62 = vrot.slane %v29, 7
    %vm63 = vcmp.lt.s32.totalorder %v31, 1
    %v64 = vsel %vm63, %v61, %v62
    %v65 = vsel %vm63, %v62, %v61
    %v66 = vrot.slane %v28, 1
    %v67 = vrot.slane %v29, 1
    %vm68 = vcmp.lt.s32.totalorder %v31, 7
    %v69 = vsel %vm68, %v66, %v67
    %v70 = vsel %vm68, %v67, %v66
    %v71 = vrot.slane %v26, 7
    %v72 = vrot.slane %v27, 7
    %v73 = vsel %vm63, %v71, %v72
    %v74 = vsel %vm63, %v72, %v71
    %v75 = vrot.slane %v26, 1
    %v76 = vrot.slane %v27, 1
    %v77 = vsel %vm68, %v75, %v76
    %v78 = vsel %vm68, %v76, %v75
    %vm79 = vcmask 1047808
    %80 = vrot.lane.b32.xlu0 %v65, 32
    %v81 = vpop.permute.xlu0 %80
    %v82 = vsel %vm79, %v81, %v65
    %83 = vrot.lane.b32.xlu0 %v64, 32
    %v84 = vpop.permute.xlu0 %83
    %v85 = vsel %vm79, %v84, %v64
    %86 = vrot.lane.b32.xlu0 %v82, 32
    %v87 = vpop.permute.xlu0 %86
    %88 = vrot.lane.b32.xlu0 %v85, 32
    %v89 = vpop.permute.xlu0 %88
    %v90 = vsel %vm79, %v87, %v65
    %v91 = vsel %vm79, %v89, %v64
    %92 = vrot.lane.b32.xlu0 %v74, 32
    %v93 = vpop.permute.xlu0 %92
    %v94 = vsel %vm79, %v93, %v74
    %95 = vrot.lane.b32.xlu0 %v73, 32
    %v96 = vpop.permute.xlu0 %95
    %v97 = vsel %vm79, %v96, %v73
    %98 = vrot.lane.b32.xlu0 %v94, 32
    %v99 = vpop.permute.xlu0 %98
    %100 = vrot.lane.b32.xlu0 %v97, 32
    %v101 = vpop.permute.xlu0 %100
    %v102 = vsel %vm79, %v99, %v74
    %v103 = vsel %vm79, %v101, %v73
    %106 = vrot.lane.b32.xlu0 %v90, 97
    %v107 = vpop.permute.xlu0 %106
    %108 = vrot.lane.b32.xlu0 %v91, 97
    %v109 = vpop.permute.xlu0 %108
    %v112 = vsel %vm53, %v107, 0.0
    %v113 = vsel %vm54, %v109, 0.0
    %116 = vrot.lane.b32.xlu0 %v102, 97
    %v117 = vpop.permute.xlu0 %116
    %118 = vrot.lane.b32.xlu0 %v103, 97
    %v119 = vpop.permute.xlu0 %118
    %v122 = vsub.f32 %v26, %v117
    %v123 = vsub.f32 %v27, %v119
    %vm124 = vcmp.ne.f32.partialorder %v112, 0.0
    %vm125 = vcmp.ne.f32.partialorder %v113, 0.0
    %v126 = vmul.f32 %v112, %v122
    %v127 = vmul.f32 %v113, %v123
    %vm128 = vcmp.le.f32.partialorder %v126, 0.0
    %vm129 = vcmp.le.f32.partialorder %v127, 0.0
    %vm130 = vmand %vm124, %vm128
    %vm131 = vmand %vm125, %vm129
    %v132 = vmul.f32 %v112, %v24
    %v133 = vmul.f32 %v113, %v25
    %v134 = vsub.f32 1.0, %v132
    %v135 = vsub.f32 1.0, %v133
    %v136 = vsel %vm130, %v134, 0.0
    %v137 = vsel %vm131, %v135, 0.0
    %v138 = vadd.f32 %v136, 0.0
    %v139 = vadd.f32 %v137, 0.0
    %v140 = vsel %vm47, %v65, 0.0
    %v141 = vsel %vm48, %v64, 0.0
    %v142 = vsub.f32 %v26, %v74
    %v143 = vsub.f32 %v27, %v73
    %vm144 = vcmp.ne.f32.partialorder %v140, 0.0
    %vm145 = vcmp.ne.f32.partialorder %v141, 0.0
    %v146 = vmul.f32 %v140, %v142
    %v147 = vmul.f32 %v141, %v143
    %vm148 = vcmp.le.f32.partialorder %v146, 0.0
    %vm149 = vcmp.le.f32.partialorder %v147, 0.0
    %vm150 = vmand %vm144, %vm148
    %vm151 = vmand %vm145, %vm149
    %v152 = vmul.f32 %v140, %v24
    %v153 = vmul.f32 %v141, %v25
    %v154 = vsub.f32 1.0, %v152
    %v155 = vsub.f32 1.0, %v153
    %v156 = vsel %vm150, %v154, 0.0
    %v157 = vsel %vm151, %v155, 0.0
    %v158 = vadd.f32 %v138, %v156
    %v159 = vadd.f32 %v139, %v157
    %160 = vrot.lane.b32.xlu0 %v90, 127
    %v161 = vpop.permute.xlu0 %160
    %162 = vrot.lane.b32.xlu0 %v91, 127
    %v163 = vpop.permute.xlu0 %162
    %v166 = vsel %vm55, %v161, 0.0
    %v167 = vsel %vm56, %v163, 0.0
    %168 = vrot.lane.b32.xlu0 %v102, 127
    %v169 = vpop.permute.xlu0 %168
    %170 = vrot.lane.b32.xlu0 %v103, 127
    %v171 = vpop.permute.xlu0 %170
    %v174 = vsub.f32 %v26, %v169
    %v175 = vsub.f32 %v27, %v171
    %vm176 = vcmp.ne.f32.partialorder %v166, 0.0
    %vm177 = vcmp.ne.f32.partialorder %v167, 0.0
    %v178 = vmul.f32 %v166, %v174
    %v179 = vmul.f32 %v167, %v175
    %vm180 = vcmp.le.f32.partialorder %v178, 0.0
    %vm181 = vcmp.le.f32.partialorder %v179, 0.0
    %vm182 = vmand %vm176, %vm180
    %vm183 = vmand %vm177, %vm181
    %v184 = vmul.f32 %v166, %v24
    %v185 = vmul.f32 %v167, %v25
    %v186 = vsub.f32 1.0, %v184
    %v187 = vsub.f32 1.0, %v185
    %v188 = vsel %vm182, %v186, 0.0
    %v189 = vsel %vm183, %v187, 0.0
    %v190 = vadd.f32 %v158, %v188
    %v191 = vadd.f32 %v159, %v189
    %192 = vrot.lane.b32.xlu0 %v28, 32
    %v193 = vpop.permute.xlu0 %192
    %v194 = vsel %vm79, %v193, %v28
    %195 = vrot.lane.b32.xlu0 %v29, 32
    %v196 = vpop.permute.xlu0 %195
    %v197 = vsel %vm79, %v196, %v29
    %198 = vrot.lane.b32.xlu0 %v194, 32
    %v199 = vpop.permute.xlu0 %198
    %200 = vrot.lane.b32.xlu0 %v197, 32
    %v201 = vpop.permute.xlu0 %200
    %v202 = vsel %vm79, %v199, %v28
    %v203 = vsel %vm79, %v201, %v29
    %204 = vrot.lane.b32.xlu0 %v26, 32
    %v205 = vpop.permute.xlu0 %204
    %v206 = vsel %vm79, %v205, %v26
    %207 = vrot.lane.b32.xlu0 %v27, 32
    %v208 = vpop.permute.xlu0 %207
    %v209 = vsel %vm79, %v208, %v27
    %210 = vrot.lane.b32.xlu0 %v206, 32
    %v211 = vpop.permute.xlu0 %210
    %212 = vrot.lane.b32.xlu0 %v209, 32
    %v213 = vpop.permute.xlu0 %212
    %v214 = vsel %vm79, %v211, %v26
    %v215 = vsel %vm79, %v213, %v27
    %218 = vrot.lane.b32.xlu0 %v202, 97
    %v219 = vpop.permute.xlu0 %218
    %220 = vrot.lane.b32.xlu0 %v203, 97
    %v221 = vpop.permute.xlu0 %220
    %v224 = vsel %vm51, %v219, 0.0
    %v225 = vsel %vm51, %v221, 0.0
    %228 = vrot.lane.b32.xlu0 %v214, 97
    %v229 = vpop.permute.xlu0 %228
    %230 = vrot.lane.b32.xlu0 %v215, 97
    %v231 = vpop.permute.xlu0 %230
    %v234 = vsub.f32 %v26, %v229
    %v235 = vsub.f32 %v27, %v231
    %vm236 = vcmp.ne.f32.partialorder %v224, 0.0
    %vm237 = vcmp.ne.f32.partialorder %v225, 0.0
    %v238 = vmul.f32 %v224, %v234
    %v239 = vmul.f32 %v225, %v235
    %vm240 = vcmp.le.f32.partialorder %v238, 0.0
    %vm241 = vcmp.le.f32.partialorder %v239, 0.0
    %vm242 = vmand %vm236, %vm240
    %vm243 = vmand %vm237, %vm241
    %v244 = vmul.f32 %v224, %v24
    %v245 = vmul.f32 %v225, %v25
    %v246 = vsub.f32 1.0, %v244
    %v247 = vsub.f32 1.0, %v245
    %v248 = vsel %vm242, %v246, 0.0
    %v249 = vsel %vm243, %v247, 0.0
    %v250 = vadd.f32 %v190, %v248
    %v251 = vadd.f32 %v191, %v249
    %vm252 = vcmp.ne.f32.partialorder %v28, 0.0
    %vm253 = vcmp.ne.f32.partialorder %v29, 0.0
    %v254 = vmul.f32 %v28, %v24
    %v255 = vmul.f32 %v29, %v25
    %v256 = vsub.f32 1.0, %v254
    %v257 = vsub.f32 1.0, %v255
    %v258 = vsel %vm252, %v256, 0.0
    %v259 = vsel %vm253, %v257, 0.0
    %v260 = vadd.f32 %v250, %v258
    %v261 = vadd.f32 %v251, %v259
    %262 = vrot.lane.b32.xlu0 %v202, 127
    %v263 = vpop.permute.xlu0 %262
    %264 = vrot.lane.b32.xlu0 %v203, 127
    %v265 = vpop.permute.xlu0 %264
    %v268 = vsel %vm52, %v263, 0.0
    %v269 = vsel %vm52, %v265, 0.0
    %270 = vrot.lane.b32.xlu0 %v214, 127
    %v271 = vpop.permute.xlu0 %270
    %272 = vrot.lane.b32.xlu0 %v215, 127
    %v273 = vpop.permute.xlu0 %272
    %v276 = vsub.f32 %v26, %v271
    %v277 = vsub.f32 %v27, %v273
    %vm278 = vcmp.ne.f32.partialorder %v268, 0.0
    %vm279 = vcmp.ne.f32.partialorder %v269, 0.0
    %v280 = vmul.f32 %v268, %v276
    %v281 = vmul.f32 %v269, %v277
    %vm282 = vcmp.le.f32.partialorder %v280, 0.0
    %vm283 = vcmp.le.f32.partialorder %v281, 0.0
    %vm284 = vmand %vm278, %vm282
    %vm285 = vmand %vm279, %vm283
    %v286 = vmul.f32 %v268, %v24
    %v287 = vmul.f32 %v269, %v25
    %v288 = vsub.f32 1.0, %v286
    %v289 = vsub.f32 1.0, %v287
    %v290 = vsel %vm284, %v288, 0.0
    %v291 = vsel %vm285, %v289, 0.0
    %v292 = vadd.f32 %v260, %v290
    %v293 = vadd.f32 %v261, %v291
    %294 = vrot.lane.b32.xlu0 %v69, 32
    %v295 = vpop.permute.xlu0 %294
    %v296 = vsel %vm79, %v295, %v69
    %297 = vrot.lane.b32.xlu0 %v70, 32
    %v298 = vpop.permute.xlu0 %297
    %v299 = vsel %vm79, %v298, %v70
    %300 = vrot.lane.b32.xlu0 %v296, 32
    %v301 = vpop.permute.xlu0 %300
    %302 = vrot.lane.b32.xlu0 %v299, 32
    %v303 = vpop.permute.xlu0 %302
    %v304 = vsel %vm79, %v301, %v69
    %v305 = vsel %vm79, %v303, %v70
    %306 = vrot.lane.b32.xlu0 %v77, 32
    %v307 = vpop.permute.xlu0 %306
    %v308 = vsel %vm79, %v307, %v77
    %309 = vrot.lane.b32.xlu0 %v78, 32
    %v310 = vpop.permute.xlu0 %309
    %v311 = vsel %vm79, %v310, %v78
    %312 = vrot.lane.b32.xlu0 %v308, 32
    %v313 = vpop.permute.xlu0 %312
    %314 = vrot.lane.b32.xlu0 %v311, 32
    %v315 = vpop.permute.xlu0 %314
    %v316 = vsel %vm79, %v313, %v77
    %v317 = vsel %vm79, %v315, %v78
    %320 = vrot.lane.b32.xlu0 %v304, 97
    %v321 = vpop.permute.xlu0 %320
    %322 = vrot.lane.b32.xlu0 %v305, 97
    %v323 = vpop.permute.xlu0 %322
    %v326 = vsel %vm57, %v321, 0.0
    %v327 = vsel %vm58, %v323, 0.0
    %330 = vrot.lane.b32.xlu0 %v316, 97
    %v331 = vpop.permute.xlu0 %330
    %332 = vrot.lane.b32.xlu0 %v317, 97
    %v333 = vpop.permute.xlu0 %332
    %v336 = vsub.f32 %v26, %v331
    %v337 = vsub.f32 %v27, %v333
    %vm338 = vcmp.ne.f32.partialorder %v326, 0.0
    %vm339 = vcmp.ne.f32.partialorder %v327, 0.0
    %v340 = vmul.f32 %v326, %v336
    %v341 = vmul.f32 %v327, %v337
    %vm342 = vcmp.le.f32.partialorder %v340, 0.0
    %vm343 = vcmp.le.f32.partialorder %v341, 0.0
    %vm344 = vmand %vm338, %vm342
    %vm345 = vmand %vm339, %vm343
    %v346 = vmul.f32 %v326, %v24
    %v347 = vmul.f32 %v327, %v25
    %v348 = vsub.f32 1.0, %v346
    %v349 = vsub.f32 1.0, %v347
    %v350 = vsel %vm344, %v348, 0.0
    %v351 = vsel %vm345, %v349, 0.0
    %v352 = vadd.f32 %v292, %v350
    %v353 = vadd.f32 %v293, %v351
    %v354 = vsel %vm49, %v69, 0.0
    %v355 = vsel %vm50, %v70, 0.0
    %v356 = vsub.f32 %v26, %v77
    %v357 = vsub.f32 %v27, %v78
    %vm358 = vcmp.ne.f32.partialorder %v354, 0.0
    %vm359 = vcmp.ne.f32.partialorder %v355, 0.0
    %v360 = vmul.f32 %v354, %v356
    %v361 = vmul.f32 %v355, %v357
    %vm362 = vcmp.le.f32.partialorder %v360, 0.0
    %vm363 = vcmp.le.f32.partialorder %v361, 0.0
    %vm364 = vmand %vm358, %vm362
    %vm365 = vmand %vm359, %vm363
    %v366 = vmul.f32 %v354, %v24
    %v367 = vmul.f32 %v355, %v25
    %v368 = vsub.f32 1.0, %v366
    %v369 = vsub.f32 1.0, %v367
    %v370 = vsel %vm364, %v368, 0.0
    %v371 = vsel %vm365, %v369, 0.0
    %v372 = vadd.f32 %v352, %v370
    %v373 = vadd.f32 %v353, %v371
    %374 = vrot.lane.b32.xlu0 %v304, 127
    %v375 = vpop.permute.xlu0 %374
    %376 = vrot.lane.b32.xlu0 %v305, 127
    %v377 = vpop.permute.xlu0 %376
    %v380 = vsel %vm59, %v375, 0.0
    %v381 = vsel %vm60, %v377, 0.0
    %382 = vrot.lane.b32.xlu0 %v316, 127
    %v383 = vpop.permute.xlu0 %382
    %384 = vrot.lane.b32.xlu0 %v317, 127
    %v385 = vpop.permute.xlu0 %384
    %v388 = vsub.f32 %v26, %v383
    %v389 = vsub.f32 %v27, %v385
    %vm390 = vcmp.ne.f32.partialorder %v380, 0.0
    %vm391 = vcmp.ne.f32.partialorder %v381, 0.0
    %v392 = vmul.f32 %v380, %v388
    %v393 = vmul.f32 %v381, %v389
    %vm394 = vcmp.le.f32.partialorder %v392, 0.0
    %vm395 = vcmp.le.f32.partialorder %v393, 0.0
    %vm396 = vmand %vm390, %vm394
    %vm397 = vmand %vm391, %vm395
    %v398 = vmul.f32 %v380, %v24
    %v399 = vmul.f32 %v381, %v25
    %v400 = vsub.f32 1.0, %v398
    %v401 = vsub.f32 1.0, %v399
    %v402 = vsel %vm396, %v400, 0.0
    %v403 = vsel %vm397, %v401, 0.0
    %v404 = vadd.f32 %v372, %v402
    %v405 = vadd.f32 %v373, %v403
    %vm406 = vcmask 261120
    %v407 = vsel %vm406, %v404, 0.0
    %408 = vadd.xlane.f32.xlu0 %v407
    %v409 = vpop.xlane.xlu0 %408
    %v410 = vsel %vm406, %v405, 0.0
    %411 = vadd.xlane.f32.xlu0 %v410
    %v412 = vpop.xlane.xlu0 %411
    %v413 = vadd.f32 %v409, %v412
    %v414 = vrot.slane %v413, 4
    %v415 = vadd.f32 %v413, %v414
    %v416 = vrot.slane %v415, 2
    %v417 = vadd.f32 %v415, %v416
    %v418 = vrot.slane %v417, 1
    %v419 = vadd.f32 %v417, %v418
    %vm420 = vcmask 0
    %421 = vst.msk [vmem:[#allocation2] sm:$0x1] %vm420, %v419
    // Predicated region
    $region14: #{elevation_loss.1} parent=1 // pred_check
      _
    $region15: #{elevation_loss.1} parent=1 // pred_check_branch
      %423 = sbr.rel (0) target = $region17
    $region16: #{elevation_loss.1} parent=1 // pred_region
      %425 = vsyncadd [#allocation3], 0
      %s427 = sshll.u32 [#allocation2], 4
      %s428 = int_to_ptr.vmem [resolvable:$true] %s427
      %s429 = sshll.u32 %s3, 4
      %s430 = int_to_ptr.hbm [resolvable:$true] %s429
      %432 = dma.vmem_to_hbm [thread:$0]  %s428, 16, %s430, [#allocation3]
    $region17: #{elevation_loss.1} parent=1 // pred_fallthru
      _
    // Predicated region
    $region18: #{elevation_loss.1} parent=1 // pred_check
      _
    $region19: #{elevation_loss.1} parent=1 // pred_check_branch
      %434 = sbr.rel (0) target = $region21
    $region20: #{elevation_loss.1} parent=1 // pred_region
      %436 = dma.done [#allocation3], 16
    $region21: #{elevation_loss.1} parent=1 // pred_fallthru
      _
    %437 = vsyncpa [#allocation3], 1

</llo_original>
